<compile_context>
chip_gen: v6e
topology: v6e:2x2x1
jax: 0.10.0
libtpu: 0.0.40
codegen_flags: <defaults>
</compile_context>

<pallas_src>
from functools import partial

import numpy as np
import jax
import jax.numpy as jnp
from jax.experimental import pallas as pl
from jax.experimental.pallas import tpu as pltpu

_INV_SOFTPLUS_1 = float(np.log(np.expm1(1.0)))  # bias s.t. softplus(bias) == 1.0
_SCALE_LB = 1e-4


def _softplus(x):
    # numerically stable softplus using only exp/log (safe Mosaic lowering, EUP)
    return jnp.maximum(x, 0.0) + jnp.log(1.0 + jnp.exp(-jnp.abs(x)))


def _hetero_actor_kernel(w_ref, b_ref, x_ref, out_ref):
    """One grid step = TB environments (lanes) x 2*Nj rows (sublanes).

    w_ref  : VMEM f32[2Nj, 2Nj]  adjacency + affine chain folded into one map
    b_ref  : VMEM f32[2Nj, 1]    per-row bias (deg*v_deg + c; softplus pre-bias
                                  already folded into the raw rows)
    x_ref  : VMEM f32[2Nj, TB]   raw joint features, row = feat*Nj + joint
    out_ref: VMEM f32[2Nj, TB]   rows [0:Nj] = loc, rows [Nj:2Nj] = scale
    """
    # Single tiny MXU push; everything else is VPU/EUP (no XLU in the body
    # except the one-off lane broadcast of the bias column).
    y = jnp.dot(w_ref[...], x_ref[...], preferred_element_type=jnp.float32)
    y = y + b_ref[...]                                     # [2Nj,1] -> [2Nj,TB]

    n_loc = y.shape[0] // 2
    row = jax.lax.broadcasted_iota(jnp.int32, y.shape, 0)
    scale = jnp.maximum(_softplus(y), _SCALE_LB)           # EUP slot is idle: free
    out_ref[...] = jnp.where(row < n_loc, y, scale)        # one wide lane-dense store


def fold_params_full(params, adj_jj):
    """Fold Linear(2,11) -> GraphConv(11,64) -> Linear(64,2) AND the adjacency
    into a single 2Nj x 2Nj map W plus per-row bias b (mathematically exact,
    the whole chain is affine):

        out_flat = W @ x_flat + b,   x_flat[g*Nj+s] = x[s, g]
        W[f*Nj+d, g*Nj+s] = A[d,s]*M_rel[g,f] + delta(d,s)*M_root[g,f]
        b[f*Nj+d]         = deg[d]*v_deg[f] + c[f]   (+ inv_softplus(1) if f==1)
    """
    adj = jnp.asarray(adj_jj, jnp.float32)
    nj = adj.shape[0]

    wj, bj = params["w_joint"], params["b_joint"]        # [2,11], [1,11]
    wrel, brel = params["w_rel"], params["b_rel"]        # [11,64], [1,64]
    wroot = params["w_root"]                             # [11,64]
    wout, bout = params["w_out"], params["b_out"]        # [64,2], [1,2]

    m_rel = wj @ wrel @ wout                             # [2,2]  (g, f)
    m_root = wj @ wroot @ wout                           # [2,2]
    v_deg = (bj @ wrel) @ wout                           # [1,2]
    c = (bj @ wroot + brel) @ wout + bout                # [1,2]

    eye = jnp.eye(nj, dtype=jnp.float32)
    w_full = (jnp.einsum("ds,gf->fdgs", adj, m_rel)
              + jnp.einsum("ds,gf->fdgs", eye, m_root)).reshape(2 * nj, 2 * nj)

    deg = adj.sum(axis=1)                                # in-degree per dst node
    node_bias = deg[:, None] * v_deg + c                 # [Nj, 2] (d, f)
    b_full = node_bias.T.reshape(2 * nj, 1)              # row = f*Nj + d
    b_full = b_full.at[nj:, :].add(_INV_SOFTPLUS_1)      # fold softplus pre-bias
    return w_full.astype(jnp.float32), b_full.astype(jnp.float32)


def _pick_tb(batch):
    """Lanes per block: aim for ~2 'parallel' blocks (one per v7x TensorCore;
    1-2 cheap sequential steps on v5e/v6e), cap at 512 lanes to stay well under
    the 64-vreg file."""
    groups = max(1, -(-batch // 128))                    # 128-lane groups needed
    return 128 * min(4, max(1, -(-groups // 2)))


def _flat_impl(x_flat, adj_jj, params, tb):
    """x_flat: f32[2*Nj, B] (row = feat*Nj + joint) -> f32[2*Nj, B]
    (rows [0:Nj] = loc, rows [Nj:2Nj] = scale)."""
    nj2, batch = x_flat.shape
    w_full, b_full = fold_params_full(params, adj_jj)

    n_blk = -(-batch // tb)
    b_pad = n_blk * tb
    if b_pad != batch:
        x_flat = jnp.pad(x_flat, ((0, 0), (0, b_pad - batch)))

    out = pl.pallas_call(
        _hetero_actor_kernel,
        out_shape=jax.ShapeDtypeStruct((nj2, b_pad), jnp.float32),
        grid_spec=pltpu.PrefetchScalarGridSpec(
            num_scalar_prefetch=0,
            grid=(n_blk,),
            in_specs=[
                pl.BlockSpec((nj2, nj2), lambda i: (0, 0)),   # W   (resident)
                pl.BlockSpec((nj2, 1), lambda i: (0, 0)),     # bias (resident)
                pl.BlockSpec((nj2, tb), lambda i: (0, i)),    # features
            ],
            out_specs=pl.BlockSpec((nj2, tb), lambda i: (0, i)),
        ),
        compiler_params=pltpu.CompilerParams(
            dimension_semantics=("parallel",)),               # 2 TCs on v7x
    )(w_full, b_full, x_flat)
    return out[:, :batch]


@partial(jax.jit, static_argnames=("tb",))
def hetero_actor_forward_flat(x_flat, adj_jj, params, *, tb):
    """Layout-native entry point (no transpose/pad plumbing in the caller)."""
    return _flat_impl(x_flat, adj_jj, params, tb)


@partial(jax.jit, static_argnames=("tb",))
def _forward_batched(joint_x, adj_jj, params, *, tb):
    b, nj, _ = joint_x.shape
    # [B, Nj, 2] -> [2*Nj, B]; kept inside the SAME jit as the kernel so the
    # layout plumbing fuses with surrounding XLA ops instead of being separate
    # HBM round-trips.
    x_flat = jnp.transpose(joint_x, (2, 1, 0)).reshape(2 * nj, b)
    out = _flat_impl(x_flat, adj_jj, params, tb)
    return out[:nj, :].T, out[nj:, :].T                       # loc, scale [B, Nj]


def hetero_actor_forward(joint_x, adj_jj, params, *, tb=None):
    """joint_x: [B, Nj, 2] (or [Nj, 2]) f32; adj_jj: [Nj, Nj] f32 A[dst, src]."""
    joint_x = jnp.asarray(joint_x, jnp.float32)
    squeeze_batch = joint_x.ndim == 2
    if squeeze_batch:
        joint_x = joint_x[None]
    b, n_joint, n_feat = joint_x.shape
    assert n_feat == 2
    if tb is None:
        tb = _pick_tb(b)
    loc, scale = _forward_batched(joint_x, jnp.asarray(adj_jj, jnp.float32),
                                  params, tb=tb)
    if squeeze_batch:
        loc, scale = loc[0], scale[0]
    return loc, scale


def init_params(key):
    """Deterministic PyTorch-Linear-style init (uniform +-1/sqrt(fan_in)).

    Weights stored pre-transposed ([in, out]); biases as [1, out] rows.
    torso_lin / joint->torso GraphConv have no effect on (loc, scale): omitted.
    """
    def linear(k, fan_in, fan_out, bias=True):
        k1, k2 = jax.random.split(k)
        bound = 1.0 / np.sqrt(fan_in)
        w = jax.random.uniform(k1, (fan_in, fan_out), jnp.float32, -bound, bound)
        b = (jax.random.uniform(k2, (1, fan_out), jnp.float32, -bound, bound)
             if bias else None)
        return w, b

    keys = jax.random.split(key, 4)
    w_joint, b_joint = linear(keys[0], 2, 11)          # joint_lin = Linear(2, 11)
    w_rel, b_rel = linear(keys[1], 11, 64)             # GraphConv.lin_rel (bias)
    w_root, _ = linear(keys[2], 11, 64, bias=False)    # GraphConv.lin_root
    w_out, b_out = linear(keys[3], 64, 2)              # output_layer = Linear(64, 2)
    return dict(w_joint=w_joint, b_joint=b_joint,
                w_rel=w_rel, b_rel=b_rel, w_root=w_root,
                w_out=w_out, b_out=b_out)


def edge_index_to_adj(edge_index, n_dst, n_src):
    """A[dst, src] = multiplicity of edge src->dst (dense scatter-add on host)."""
    adj = np.zeros((n_dst, n_src), dtype=np.float32)
    src, dst = np.asarray(edge_index)
    np.add.at(adj, (dst, src), 1.0)
    return jnp.asarray(adj)


def reference_forward(joint_x, adj_jj, p):
    """Pure-JAX unfused reference (batched over leading env axis)."""
    h = joint_x @ p["w_joint"] + p["b_joint"]                    # [B, Nj, 11]
    agg = jnp.einsum("ds,bsf->bdf", adj_jj, h)                   # [B, Nj, 11]
    conv = agg @ p["w_rel"] + p["b_rel"] + h @ p["w_root"]       # [B, Nj, 64]
    out = conv @ p["w_out"] + p["b_out"]                         # [B, Nj, 2]
    loc = out[..., 0]
    scale = jnp.maximum(jax.nn.softplus(out[..., 1] + _INV_SOFTPLUS_1), _SCALE_LB)
    return loc, scale


if __name__ == "__main__":
    key = jax.random.PRNGKey(0)
    k_params, k_joint = jax.random.split(key)

    n_env, n_joint = 200, 8                 # 200 envs -> 2 parallel 128-lane blocks
    params = init_params(k_params)

    # node features per environment (HeteroData-style joint.x [Nj, 2]); the
    # torso branch does not influence (loc, scale) and is omitted.
    joint_x = jax.random.normal(k_joint, (n_env, n_joint, 2), jnp.float32)

    # joint<->joint chain graph (shared across envs): bidirectional edges (i, i+1)
    src = np.concatenate([np.arange(n_joint - 1), np.arange(1, n_joint)])
    dst = np.concatenate([np.arange(1, n_joint), np.arange(n_joint - 1)])
    edge_index_jj = np.stack([src, dst])
    adj_jj = edge_index_to_adj(edge_index_jj, n_joint, n_joint)   # [Nj, Nj]

    loc, scale = hetero_actor_forward(joint_x, adj_jj, params)
    jax.block_until_ready((loc, scale))

    loc_ref, scale_ref = reference_forward(joint_x, adj_jj, params)
    assert loc.shape == (n_env, n_joint) and scale.shape == (n_env, n_joint)
    np.testing.assert_allclose(np.asarray(loc), np.asarray(loc_ref),
                               rtol=1e-4, atol=1e-4)
    np.testing.assert_allclose(np.asarray(scale), np.asarray(scale_ref),
                               rtol=1e-4, atol=1e-4)
    assert np.all(np.asarray(scale) >= _SCALE_LB)

    print("KERNEL_OK")
</pallas_src>

<mosaic_0001>
module attributes {stable_mosaic.version = 11 : i64} {
  func.func @_hetero_actor_kernel(%arg0: i32, %arg1: memref<16x16xf32, #tpu.memory_space<vmem>>, %arg2: memref<16x1xf32, #tpu.memory_space<vmem>>, %arg3: memref<16x128xf32, #tpu.memory_space<vmem>>, %arg4: memref<16x128xf32, #tpu.memory_space<vmem>>) attributes {dimension_semantics = [#tpu.dimension_semantics<parallel>], iteration_bounds = array<i64: 2>, scalar_prefetch = 0 : i64, scratch_operands = 0 : i64, tpu.core_type = #tpu.core_type<tc>, window_params = [{pipeline_mode = #tpu.pipeline_mode<synchronous>, transform_indices = @transform_0, window_bounds = array<i64: 16, 16>}, {pipeline_mode = #tpu.pipeline_mode<synchronous>, transform_indices = @transform_1, window_bounds = array<i64: 16, 1>}, {transform_indices = @transform_2, window_bounds = array<i64: 16, 128>}, {transform_indices = @transform_3, window_bounds = array<i64: 16, 128>}]} {
    %c0 = arith.constant 0 : index
    %c0_0 = arith.constant 0 : index
    %0 = vector.load %arg1[%c0, %c0_0] : memref<16x16xf32, #tpu.memory_space<vmem>>, vector<16x16xf32>
    %c0_1 = arith.constant 0 : index
    %c0_2 = arith.constant 0 : index
    %1 = vector.load %arg3[%c0_1, %c0_2] : memref<16x128xf32, #tpu.memory_space<vmem>>, vector<16x128xf32>
    %cst = arith.constant dense<0.000000e+00> : vector<16x128xf32>
    %2 = tpu.matmul %0, %1, %cst {dimension_numbers = #tpu.dot_dimension_numbers<[1], [0], [0], [1], [0, 0, 1, 1], [], []>} : vector<16x16xf32>, vector<16x128xf32>, vector<16x128xf32> -> vector<16x128xf32>
    %c0_3 = arith.constant 0 : index
    %c0_4 = arith.constant 0 : index
    %3 = vector.load %arg2[%c0_3, %c0_4] : memref<16x1xf32, #tpu.memory_space<vmem>>, vector<16x1xf32>
    %4 = vector.broadcast %3 : vector<16x1xf32> to vector<16x128xf32>
    %5 = arith.addf %2, %4 : vector<16x128xf32>
    %6 = tpu.iota {dimensions = array<i32: 0>} : vector<16x128xi32>
    %cst_5 = arith.constant 0.000000e+00 : f32
    %7 = vector.broadcast %cst_5 : f32 to vector<16x128xf32>
    %8 = arith.maximumf %5, %7 : vector<16x128xf32>
    %9 = math.absf %5 : vector<16x128xf32>
    %cst_6 = arith.constant 0.000000e+00 : f32
    %10 = vector.broadcast %cst_6 : f32 to vector<16x128xf32>
    %11 = arith.subf %10, %9 : vector<16x128xf32>
    %12 = math.exp %11 : vector<16x128xf32>
    %cst_7 = arith.constant 1.000000e+00 : f32
    %13 = vector.broadcast %cst_7 : f32 to vector<16x128xf32>
    %14 = arith.addf %13, %12 : vector<16x128xf32>
    %15 = math.log %14 : vector<16x128xf32>
    %16 = arith.addf %8, %15 : vector<16x128xf32>
    %cst_8 = arith.constant 9.99999974E-5 : f32
    %17 = vector.broadcast %cst_8 : f32 to vector<16x128xf32>
    %18 = arith.maximumf %16, %17 : vector<16x128xf32>
    %c8_i32 = arith.constant 8 : i32
    %19 = vector.broadcast %c8_i32 : i32 to vector<16x128xi32>
    %20 = arith.cmpi slt, %6, %19 : vector<16x128xi32>
    %21 = arith.select %20, %5, %18 : vector<16x128xi1>, vector<16x128xf32>
    %c0_9 = arith.constant 0 : index
    %c0_10 = arith.constant 0 : index
    %22 = vector.load %arg4[%c0_9, %c0_10] : memref<16x128xf32, #tpu.memory_space<vmem>>, vector<16x128xf32>
    tpu.vector_store %arg4[%c0_9, %c0_10], %21 {strides = array<i32>} : memref<16x128xf32, #tpu.memory_space<vmem>>, vector<16x128xf32>,
    return
  }
  func.func @transform_0(%arg0: i32) -> (i32, i32) {
    %c0_i32 = arith.constant 0 : i32
    %c0_i32_0 = arith.constant 0 : i32
    %c0_i32_1 = arith.constant 0 : i32
    return %c0_i32, %c0_i32_0 : i32, i32
  }
  func.func @transform_1(%arg0: i32) -> (i32, i32) {
    %c0_i32 = arith.constant 0 : i32
    %c0_i32_0 = arith.constant 0 : i32
    %c0_i32_1 = arith.constant 0 : i32
    return %c0_i32, %c0_i32_0 : i32, i32
  }
  func.func @transform_2(%arg0: i32) -> (i32, i32) {
    %c0_i32 = arith.constant 0 : i32
    %c0_i32_0 = arith.constant 0 : i32
    return %c0_i32, %arg0 : i32, i32
  }
  func.func @transform_3(%arg0: i32) -> (i32, i32) {
    %c0_i32 = arith.constant 0 : i32
    %c0_i32_0 = arith.constant 0 : i32
    return %c0_i32, %arg0 : i32, i32
  }
}

</mosaic_0001>

<llo_original>
// kernel: _forward_batched.1
$region0: #{_forward_batched.1}
  #allocation0 [shape = 'u32[]', space=smem, size = 0x4, offset = 0x4, fixed_abs, tag = 'smem constant byte address 0x4 - core index']
  #allocation1 [shape = 'u32[144,128]{1,0:T(1,128)}', space=vmem, size = 0x12000, scoped, tag = 'internal scratch']
  %s0 = inlined_call_operand.vmem [shape: f32[16,16], index: 0, kind: input, shape index: {}]
  %s1 = inlined_call_operand.vmem [shape: f32[16,1], index: 1, kind: input, shape index: {}]
  %s2 = inlined_call_operand.vmem [shape: f32[16,256], index: 2, kind: input, shape index: {}]
  %s3 = inlined_call_operand.vmem [shape: f32[16,256], index: 3, kind: output, shape index: {}]
  %s4 = sld [smem:[#allocation0]]
  $region117: #{_forward_batched.1} parent=0
    _
  %s6 = ssub.s32 1, %s4
  %s7 = scalar_select 0, %s6, %s4
  $region1: #{_forward_batched.1} parent=0
    #allocation2 [shape = 'u8[16384]{0}', space=vmem, size = 0x4000, scoped, tag = 'input window, operand 2']
    #allocation3 [shape = 'u8[16384]{0}', space=vmem, size = 0x4000, scoped, tag = 'output window, operand 0']
    loop: start=0, step=1, limit=4
    $region2: #{_forward_batched.1} parent=1 // loop_pre_header
      _
    $region3: #{_forward_batched.1} parent=1 // loop_header
      %s9 = sphi 0, %s13
      %p10 = scmp.ge.s32.totalorder %s9, 4
      %s17 = sphi 0, %s17
      %s19 = sphi 0, %s17
      %s20 = sphi 0, %s19
      %s34 = sphi 0, %s20
      %s38 = sphi 0, %s38
      %s40 = sphi 0, %s38
      %s41 = sphi 0, %s40
      %s55 = sphi 0, %s41
      %s61 = sphi 0, %s63
      %s64 = sphi 0, %s61
      %s65 = sphi 0, %s64
      %s81 = sphi 0, %s65
      %s87 = sphi 0, %s89
      %s90 = sphi 0, %s87
      %s91 = sphi 0, %s90
      %s107 = sphi 0, %s91
    $region4: #{_forward_batched.1} parent=1 // loop_header_branch
      %12 = sbr.rel (%p10) target = $region8
    $region5: #{_forward_batched.1} parent=1 // loop_body
      %s14 = ssub.s32 %s9, 1
      %s15 = ssub.s32 %s9, 2
      %s16 = sadd.s32 %s9, 1
      %s18 = sadd.s32 %s17, 1
      %p21 = scmp.eq.s32.totalorder %s9, 1
      %p22 = scmp.ne.s32.totalorder %s17, %s19
      %p23 = scmp.eq.s32.totalorder %s9, 0
      %p24 = por %p22, %p23
      %p25 = scmp.ne.s32.totalorder %s17, %s19
      %p26 = scmp.eq.s32.totalorder %s14, 1
      %p27 = por %p25, %p26
      %p28 = scmp.ne.s32.totalorder %s19, %s20
      %p29 = scmp.eq.s32.totalorder %s14, 0
      %p30 = por %p28, %p29
      %p31 = scmp.ne.s32.totalorder %s19, %s20
      %p32 = scmp.eq.s32.totalorder %s15, 1
      %p33 = por %p31, %p32
      %p35 = scmp.ne.s32.totalorder %s20, %s34
      %p36 = scmp.eq.s32.totalorder %s15, 0
      %p37 = por %p35, %p36
      %s39 = sadd.s32 %s38, 1
      %p42 = scmp.eq.s32.totalorder %s9, 1
      %p43 = scmp.ne.s32.totalorder %s38, %s40
      %p44 = scmp.eq.s32.totalorder %s9, 0
      %p45 = por %p43, %p44
      %p46 = scmp.ne.s32.totalorder %s38, %s40
      %p47 = scmp.eq.s32.totalorder %s14, 1
      %p48 = por %p46, %p47
      %p49 = scmp.ne.s32.totalorder %s40, %s41
      %p50 = scmp.eq.s32.totalorder %s14, 0
      %p51 = por %p49, %p50
      %p52 = scmp.ne.s32.totalorder %s40, %s41
      %p53 = scmp.eq.s32.totalorder %s15, 1
      %p54 = por %p52, %p53
      %p56 = scmp.ne.s32.totalorder %s41, %s55
      %p57 = scmp.eq.s32.totalorder %s15, 0
      %p58 = por %p56, %p57
      %s59 = ssub.s32 %s9, %s16
      %p60 = scmp.eq.s32.totalorder %s59, 0
      %s62 = sadd.s32 %s61, 1
      %s63 = scalar_select %p60, %s61, %s62
      %p66 = pneg %p60
      %p67 = scmp.eq.s32.totalorder %s9, 1
      %p68 = por %p66, %p67
      %p69 = scmp.ne.s32.totalorder %s61, %s64
      %p70 = scmp.eq.s32.totalorder %s9, 0
      %p71 = por %p69, %p70
      %p72 = scmp.ne.s32.totalorder %s61, %s64
      %p73 = scmp.eq.s32.totalorder %s14, 1
      %p74 = por %p72, %p73
      %p75 = scmp.ne.s32.totalorder %s64, %s65
      %p76 = scmp.eq.s32.totalorder %s14, 0
      %p77 = por %p75, %p76
      %p78 = scmp.ne.s32.totalorder %s64, %s65
      %p79 = scmp.eq.s32.totalorder %s15, 1
      %p80 = por %p78, %p79
      %p82 = scmp.ne.s32.totalorder %s65, %s81
      %p83 = scmp.eq.s32.totalorder %s15, 0
      %p84 = por %p82, %p83
      %s85 = ssub.s32 %s9, %s16
      %p86 = scmp.eq.s32.totalorder %s85, 0
      %s88 = sadd.s32 %s87, 1
      %s89 = scalar_select %p86, %s87, %s88
      %p92 = pneg %p86
      %p93 = scmp.eq.s32.totalorder %s9, 1
      %p94 = por %p92, %p93
      %p95 = scmp.ne.s32.totalorder %s87, %s90
      %p96 = scmp.eq.s32.totalorder %s9, 0
      %p97 = por %p95, %p96
      %p98 = scmp.ne.s32.totalorder %s87, %s90
      %p99 = scmp.eq.s32.totalorder %s14, 1
      %p100 = por %p98, %p99
      %p101 = scmp.ne.s32.totalorder %s90, %s91
      %p102 = scmp.eq.s32.totalorder %s14, 0
      %p103 = por %p101, %p102
      %p104 = scmp.ne.s32.totalorder %s90, %s91
      %p105 = scmp.eq.s32.totalorder %s15, 1
      %p106 = por %p104, %p105
      %p108 = scmp.ne.s32.totalorder %s91, %s107
      %p109 = scmp.eq.s32.totalorder %s15, 0
      %p110 = por %p108, %p109
      %p111 = scmp.le.s32.totalorder 1, %s9
      %p112 = scmp.lt.s32.totalorder %s9, 3
      %p113 = pnand %p111, %p112
      %p114 = pneg %p113
      // Predicated region
      $region9: #{_forward_batched.1} parent=5 // pred_check
        _
      $region10: #{_forward_batched.1} parent=5 // pred_check_branch
        %116 = sbr.rel (%p113) target = $region12
      $region11: #{_forward_batched.1} parent=5 // pred_region
        %s117 = ssub.s32 %s9, 1
        // Predicated region
        $region13: #{_forward_batched.1} parent=11 // pred_check
          %p118 = pneg %p30
        $region14: #{_forward_batched.1} parent=11 // pred_check_branch
          %120 = sbr.rel (%p118) target = $region16
        $region15: #{_forward_batched.1} parent=11 // pred_region
          _
        $region16: #{_forward_batched.1} parent=11 // pred_fallthru
          _
        // Predicated region
        $region17: #{_forward_batched.1} parent=11 // pred_check
          %p121 = pneg %p51
        $region18: #{_forward_batched.1} parent=11 // pred_check_branch
          %123 = sbr.rel (%p121) target = $region20
        $region19: #{_forward_batched.1} parent=11 // pred_region
          _
        $region20: #{_forward_batched.1} parent=11 // pred_fallthru
          _
      $region12: #{_forward_batched.1} parent=5 // pred_fallthru
        _
      %p124 = scmp.lt.s32.totalorder %s9, 2
      // Predicated region
      $region21: #{_forward_batched.1} parent=5 // pred_check
        %p125 = pneg %p124
      $region22: #{_forward_batched.1} parent=5 // pred_check_branch
        %127 = sbr.rel (%p125) target = $region24
      $region23: #{_forward_batched.1} parent=5 // pred_region
        // Predicated region
        $region25: #{_forward_batched.1} parent=23 // pred_check
          %p128 = pneg %p71
        $region26: #{_forward_batched.1} parent=23 // pred_check_branch
          %130 = sbr.rel (%p128) target = $region28
        $region27: #{_forward_batched.1} parent=23 // pred_region
          %s131 = sand.u32 %s61, 1
          %s132 = sand.u32 %s61, 1
          %s133 = smul.addr %s132, 16
          %s134 = scalar_lea.vmem [#allocation2], %s133
          %s135 = smul.addr %s9, 8
          %s136 = scalar_lea.vmem %s2, %s135
          // Predicated region
          $region29: #{_forward_batched.1} parent=27 // pred_check
            _
          $region30: #{_forward_batched.1} parent=27 // pred_check_branch
            %138 = sbr.rel (0) target = $region32
          $region31: #{_forward_batched.1} parent=27 // pred_region
            // Predicated region
            $region33: #{_forward_batched.1} parent=31 // pred_check
              _
            $region34: #{_forward_batched.1} parent=31 // pred_check_branch
              %140 = sbr.rel (0) target = $region36
            $region35: #{_forward_batched.1} parent=31 // pred_region
              // Predicated region
              $region48: #{_forward_batched.1} parent=35 // pred_check
                _
              $region49: #{_forward_batched.1} parent=35 // pred_check_branch
                %158 = sbr.rel (0) target = $region51
              $region50: #{_forward_batched.1} parent=35 // pred_region
                loop: start=0, step=1, limit=1
                $region52: #{_forward_batched.1} parent=50 // loop_pre_header
                  _
                $region53: #{_forward_batched.1} parent=50 // loop_header
                  %s160 = sphi 0, %s164
                  %p161 = scmp.ge.s32.totalorder %s160, 1
                  %s165 = sphi %s136, %s136
                  %s166 = sphi %s134, %s134
                $region54: #{_forward_batched.1} parent=50 // loop_header_branch
                  %163 = sbr.rel (%p161) target = $region58
                $region55: #{_forward_batched.1} parent=50 // loop_body
                  %v167 = vld [vmem:[%s165] sm:$0xff]
                  %168 = vst [vmem:[%s166] sm:$0xff] %v167
                  %v169 = vld [vmem:[%s165 + $0x10] sm:$0xff]
                  %170 = vst [vmem:[%s166 + $0x8] sm:$0xff] %v169
                $region56: #{_forward_batched.1} parent=50 // loop_footer
                  %s164 = sadd.s32 1, %s160
                $region57: #{_forward_batched.1} parent=50 // loop_footer_branch
                  %159 = sbr.rel target = $region53
                $region58: #{_forward_batched.1} parent=50 // loop_exit
                  _
              $region51: #{_forward_batched.1} parent=35 // pred_fallthru
                _
              // Predicated region
              $region59: #{_forward_batched.1} parent=35 // pred_check
                _
              $region60: #{_forward_batched.1} parent=35 // pred_check_branch
                %172 = sbr.rel target = $region62
              $region61: #{_forward_batched.1} parent=35 // pred_region
                _
              $region62: #{_forward_batched.1} parent=35 // pred_fallthru
                _
            $region36: #{_forward_batched.1} parent=31 // pred_fallthru
              _
            // Predicated region
            $region37: #{_forward_batched.1} parent=31 // pred_check
              _
            $region38: #{_forward_batched.1} parent=31 // pred_check_branch
              %142 = sbr.rel target = $region40
            $region39: #{_forward_batched.1} parent=31 // pred_region
              %s144 = ssub.s32 256, 1
              loop: start=0, step=1, limit=1
              $region41: #{_forward_batched.1} parent=39 // loop_pre_header
                _
              $region42: #{_forward_batched.1} parent=39 // loop_header
                %s146 = sphi 0, %s150
                %p147 = scmp.ge.s32.totalorder %s146, 1
                %s151 = sphi %s136, %s136
                %s152 = sphi %s134, %s134
              $region43: #{_forward_batched.1} parent=39 // loop_header_branch
                %149 = sbr.rel (%p147) target = $region47
              $region44: #{_forward_batched.1} parent=39 // loop_body
                %v153 = vld [vmem:[%s151] sm:%s144]
                %154 = vst [vmem:[%s152] sm:%s144] %v153
                %v155 = vld [vmem:[%s151 + $0x10] sm:%s144]
                %156 = vst [vmem:[%s152 + $0x8] sm:%s144] %v155
              $region45: #{_forward_batched.1} parent=39 // loop_footer
                %s150 = sadd.s32 1, %s146
              $region46: #{_forward_batched.1} parent=39 // loop_footer_branch
                %145 = sbr.rel target = $region42
              $region47: #{_forward_batched.1} parent=39 // loop_exit
                _
            $region40: #{_forward_batched.1} parent=31 // pred_fallthru
              _
          $region32: #{_forward_batched.1} parent=27 // pred_fallthru
            _
          %173 = vnop
        $region28: #{_forward_batched.1} parent=23 // pred_fallthru
          _
      $region24: #{_forward_batched.1} parent=5 // pred_fallthru
        _
      %p174 = scmp.le.s32.totalorder 1, %s9
      %p175 = scmp.lt.s32.totalorder %s9, 3
      %p176 = pnand %p174, %p175
      %p177 = pneg %p176
      // Predicated region
      $region63: #{_forward_batched.1} parent=5 // pred_check
        _
      $region64: #{_forward_batched.1} parent=5 // pred_check_branch
        %179 = sbr.rel (%p176) target = $region66
      $region65: #{_forward_batched.1} parent=5 // pred_region
        %s180 = ssub.s32 %s9, 1
        %s181 = sand.u32 %s64, 1
        %s182 = sand.u32 %s64, 1
        %s183 = smul.addr %s182, 16
        %s184 = scalar_lea.vmem [#allocation2], %s183
        // Predicated region
        $region67: #{_forward_batched.1} parent=65 // pred_check
          %p185 = pneg %p77
        $region68: #{_forward_batched.1} parent=65 // pred_check_branch
          %187 = sbr.rel (%p185) target = $region70
        $region69: #{_forward_batched.1} parent=65 // pred_region
          _
        $region70: #{_forward_batched.1} parent=65 // pred_fallthru
          _
        %p188 = pneg %p30
        %p189 = pneg %p27
        %p190 = pneg %p51
        %p191 = pneg %p48
        %s192 = sand.u32 %s64, 1
        %s193 = sand.u32 %s64, 1
        %s194 = smul.addr %s193, 16
        %s195 = scalar_lea.vmem [#allocation2], %s194
        %p196 = pneg %p77
        %p197 = pneg %p74
        %p198 = pneg %p103
        %p199 = pneg %p100
        %s200 = sand.u32 %s90, 1
        %s201 = sand.u32 %s90, 1
        %s202 = smul.addr %s201, 16
        %s203 = scalar_lea.vmem [#allocation3], %s202
        %v204 = vld [vmem:[%s0] sm:$0xff]
        %v205 = vld [vmem:[%s0 + $0x8] sm:$0xff]
        %v206 = vld [vmem:[%s184] sm:$0xff]
        %v207 = vld [vmem:[%s184 + $0x8] sm:$0xff]
        %v208 = vld [vmem:[%s1] sm:$0xff]
        %v209 = vld [vmem:[%s1 + $0x8] sm:$0xff]
        %211 = vset.pattern.permute.xlu0 0
        %212 = vperm.xlu0 %211, %v208
        %v213 = vpop.permute.xlu0 %212
        %216 = vset.pattern.permute.xlu0 0
        %217 = vperm.xlu0 %216, %v209
        %v218 = vpop.permute.xlu0 %217
        %vm220 = vcmask 130048
        %v222 = vsel %vm220, %v204, 0
        %v225 = vsel %vm220, %v205, 0
        %227 = vmatprep.subr.mxu0 0.0
        %228 = vmatpush1.msra.mxu0 0.0
        %229 = vmatprep.subr.mxu0 0.0
        %230 = vmatpush1.msra.mxu0 0.0
        %231 = vmatprep.subr.mxu0 0.0
        %232 = vmatpush1.msra.mxu0 0.0
        %233 = vmatprep.subr.mxu0 0.0
        %234 = vmatpush1.msra.mxu0 0.0
        %235 = vmatprep.subr.mxu0 0.0
        %236 = vmatpush1.msra.mxu0 0.0
        %237 = vmatprep.subr.mxu0 0.0
        %238 = vmatpush1.msra.mxu0 0.0
        %239 = vmatprep.subr.mxu0 0.0
        %240 = vmatpush1.msra.mxu0 0.0
        %241 = vmatprep.subr.mxu0 0.0
        %242 = vmatpush1.msra.mxu0 0.0
        %243 = vmatprep.subr.mxu0 0.0
        %244 = vmatpush1.msra.mxu0 0.0
        %245 = vmatprep.subr.mxu0 0.0
        %246 = vmatpush1.msra.mxu0 0.0
        %247 = vmatprep.subr.mxu0 0.0
        %248 = vmatpush1.msra.mxu0 0.0
        %249 = vmatprep.subr.mxu0 0.0
        %250 = vmatpush1.msra.mxu0 0.0
        %251 = vmatprep.subr.mxu0 0.0
        %252 = vmatpush1.msra.mxu0 0.0
        %253 = vmatprep.subr.mxu0 0.0
        %254 = vmatpush1.msra.mxu0 0.0
        %255 = vmatprep.subr.mxu0 0.0
        %256 = vmatpush1.msra.mxu0 %v207
        %257 = vmatprep.subr.mxu0 0.0
        %258 = vmatpush1.msra.mxu0 %v206
        %259 = vmatprep.subr.mxu0 0.0
        %260 = vmatpush2.msra.mxu0 0.0
        %261 = vmatprep.subr.mxu0 0.0
        %262 = vmatpush2.msra.mxu0 0.0
        %263 = vmatprep.subr.mxu0 0.0
        %264 = vmatpush2.msra.mxu0 0.0
        %265 = vmatprep.subr.mxu0 0.0
        %266 = vmatpush2.msra.mxu0 0.0
        %267 = vmatprep.subr.mxu0 0.0
        %268 = vmatpush2.msra.mxu0 0.0
        %269 = vmatprep.subr.mxu0 0.0
        %270 = vmatpush2.msra.mxu0 0.0
        %271 = vmatprep.subr.mxu0 0.0
        %272 = vmatpush2.msra.mxu0 0.0
        %273 = vmatprep.subr.mxu0 0.0
        %274 = vmatpush2.msra.mxu0 0.0
        %275 = vmatprep.subr.mxu0 0.0
        %276 = vmatpush2.msra.mxu0 0.0
        %277 = vmatprep.subr.mxu0 0.0
        %278 = vmatpush2.msra.mxu0 0.0
        %279 = vmatprep.subr.mxu0 0.0
        %280 = vmatpush2.msra.mxu0 0.0
        %281 = vmatprep.subr.mxu0 0.0
        %282 = vmatpush2.msra.mxu0 0.0
        %283 = vmatprep.subr.mxu0 0.0
        %284 = vmatpush2.msra.mxu0 0.0
        %285 = vmatprep.subr.mxu0 0.0
        %286 = vmatpush2.msra.mxu0 0.0
        %287 = vmatprep.subr.mxu0 0.0
        %288 = vmatpush2.msra.mxu0 0.0
        %289 = vmatprep.subr.mxu0 0.0
        %290 = vmatpush2.msra.mxu0 0.0
        %291 = vmatprep.mubr.f32.mxu0 0.0
        %292 = vmatmul.mubr.f32.gmra.mxu0 %v222
        %v293 = vpop.f32.mrf.mxu0
        %v294 = vadd.f32 %v213, %v293
        %v295 = vpop.f32.mrf.mxu0
        %296 = vmatprep.mubr.f32.mxu0 0.0
        %297 = vmatmul.mubr.f32.gmra.mxu0 %v225
        %v298 = vpop.f32.mrf.mxu0
        %v299 = vadd.f32 %v218, %v298
        %v300 = vpop.f32.mrf.mxu0
        %301 = vdwg.mxu0
        %v302 = vlaneseq
        %v303 = vshrl.u32 %v302, 7
        %v304 = vadd.s32 %v303, 8
        %v305 = vmax.f32 %v294, 0.0
        %v306 = vmax.f32 %v299, 0.0
        %v307 = vand.u32 2147483647, %v294
        %v308 = vand.u32 2147483647, %v299
        %v309 = vsub.f32 0.0, %v307
        %v310 = vsub.f32 0.0, %v308
        %v311 = vmul.f32 %v309, 1.442695
        %v312 = vpow.pop %v311
        %v313 = vmul.f32 %v310, 1.442695
        %v314 = vpow.pop %v313
        %v315 = vadd.f32 %v312, 1.0
        %v316 = vadd.f32 %v314, 1.0
        %v317 = vlog2.pop %v315
        %v318 = vmul.f32 %v317, 0.6931472
        %v319 = vlog2.pop %v316
        %v320 = vmul.f32 %v319, 0.6931472
        %v321 = vadd.f32 %v305, %v318
        %v322 = vadd.f32 %v306, %v320
        %v323 = vmax.f32 %v321, 0.0001
        %v324 = vmax.f32 %v322, 0.0001
        %vm325 = vcmp.lt.s32.totalorder %v303, 8
        %vm326 = vcmp.lt.s32.totalorder %v304, 8
        %v327 = vsel %vm325, %v294, %v323
        %v328 = vsel %vm326, %v299, %v324
        %329 = vst [vmem:[%s203] sm:$0xff] %v327
        %330 = vst [vmem:[%s203 + $0x8] sm:$0xff] %v328
        %s331 = sand.u32 %s90, 1
        %s332 = sand.u32 %s90, 1
        %s333 = smul.addr %s332, 16
        %s334 = scalar_lea.vmem [#allocation3], %s333
        // Predicated region
        $region71: #{_forward_batched.1} parent=65 // pred_check
          %p335 = pneg %p100
        $region72: #{_forward_batched.1} parent=65 // pred_check_branch
          %337 = sbr.rel (%p335) target = $region74
        $region73: #{_forward_batched.1} parent=65 // pred_region
          %s338 = smul.addr %s14, 8
          %s339 = scalar_lea.vmem %s3, %s338
          // Predicated region
          $region75: #{_forward_batched.1} parent=73 // pred_check
            _
          $region76: #{_forward_batched.1} parent=73 // pred_check_branch
            %341 = sbr.rel (0) target = $region78
          $region77: #{_forward_batched.1} parent=73 // pred_region
            // Predicated region
            $region79: #{_forward_batched.1} parent=77 // pred_check
              _
            $region80: #{_forward_batched.1} parent=77 // pred_check_branch
              %343 = sbr.rel (0) target = $region82
            $region81: #{_forward_batched.1} parent=77 // pred_region
              // Predicated region
              $region94: #{_forward_batched.1} parent=81 // pred_check
                _
              $region95: #{_forward_batched.1} parent=81 // pred_check_branch
                %361 = sbr.rel (0) target = $region97
              $region96: #{_forward_batched.1} parent=81 // pred_region
                loop: start=0, step=1, limit=1
                $region98: #{_forward_batched.1} parent=96 // loop_pre_header
                  _
                $region99: #{_forward_batched.1} parent=96 // loop_header
                  %s363 = sphi 0, %s367
                  %p364 = scmp.ge.s32.totalorder %s363, 1
                  %s368 = sphi %s334, %s334
                  %s369 = sphi %s339, %s339
                $region100: #{_forward_batched.1} parent=96 // loop_header_branch
                  %366 = sbr.rel (%p364) target = $region104
                $region101: #{_forward_batched.1} parent=96 // loop_body
                  %v370 = vld [vmem:[%s368] sm:$0xff]
                  %371 = vst [vmem:[%s369] sm:$0xff] %v370
                  %v372 = vld [vmem:[%s368 + $0x8] sm:$0xff]
                  %373 = vst [vmem:[%s369 + $0x10] sm:$0xff] %v372
                $region102: #{_forward_batched.1} parent=96 // loop_footer
                  %s367 = sadd.s32 1, %s363
                $region103: #{_forward_batched.1} parent=96 // loop_footer_branch
                  %362 = sbr.rel target = $region99
                $region104: #{_forward_batched.1} parent=96 // loop_exit
                  _
              $region97: #{_forward_batched.1} parent=81 // pred_fallthru
                _
              // Predicated region
              $region105: #{_forward_batched.1} parent=81 // pred_check
                _
              $region106: #{_forward_batched.1} parent=81 // pred_check_branch
                %375 = sbr.rel target = $region108
              $region107: #{_forward_batched.1} parent=81 // pred_region
                _
              $region108: #{_forward_batched.1} parent=81 // pred_fallthru
                _
            $region82: #{_forward_batched.1} parent=77 // pred_fallthru
              _
            // Predicated region
            $region83: #{_forward_batched.1} parent=77 // pred_check
              _
            $region84: #{_forward_batched.1} parent=77 // pred_check_branch
              %345 = sbr.rel target = $region86
            $region85: #{_forward_batched.1} parent=77 // pred_region
              %s347 = ssub.s32 256, 1
              loop: start=0, step=1, limit=1
              $region87: #{_forward_batched.1} parent=85 // loop_pre_header
                _
              $region88: #{_forward_batched.1} parent=85 // loop_header
                %s349 = sphi 0, %s353
                %p350 = scmp.ge.s32.totalorder %s349, 1
                %s354 = sphi %s334, %s334
                %s355 = sphi %s339, %s339
              $region89: #{_forward_batched.1} parent=85 // loop_header_branch
                %352 = sbr.rel (%p350) target = $region93
              $region90: #{_forward_batched.1} parent=85 // loop_body
                %v356 = vld [vmem:[%s354] sm:%s347]
                %357 = vst [vmem:[%s355] sm:%s347] %v356
                %v358 = vld [vmem:[%s354 + $0x8] sm:%s347]
                %359 = vst [vmem:[%s355 + $0x10] sm:%s347] %v358
              $region91: #{_forward_batched.1} parent=85 // loop_footer
                %s353 = sadd.s32 1, %s349
              $region92: #{_forward_batched.1} parent=85 // loop_footer_branch
                %348 = sbr.rel target = $region88
              $region93: #{_forward_batched.1} parent=85 // loop_exit
                _
            $region86: #{_forward_batched.1} parent=77 // pred_fallthru
              _
          $region78: #{_forward_batched.1} parent=73 // pred_fallthru
            _
          %376 = vnop
        $region74: #{_forward_batched.1} parent=65 // pred_fallthru
          _
      $region66: #{_forward_batched.1} parent=5 // pred_fallthru
        _
      %p377 = scmp.le.s32.totalorder 2, %s9
      // Predicated region
      $region109: #{_forward_batched.1} parent=5 // pred_check
        %p378 = pneg %p377
      $region110: #{_forward_batched.1} parent=5 // pred_check_branch
        %380 = sbr.rel (%p378) target = $region112
      $region111: #{_forward_batched.1} parent=5 // pred_region
        %s381 = ssub.s32 %s9, 2
        // Predicated region
        $region113: #{_forward_batched.1} parent=111 // pred_check
          %p382 = pneg %p106
        $region114: #{_forward_batched.1} parent=111 // pred_check_branch
          %384 = sbr.rel (%p382) target = $region116
        $region115: #{_forward_batched.1} parent=111 // pred_region
          %s385 = sand.u32 %s91, 1
          %s386 = sand.u32 %s91, 1
          %s387 = smul.addr %s386, 16
          %s388 = scalar_lea.vmem [#allocation3], %s387
        $region116: #{_forward_batched.1} parent=111 // pred_fallthru
          _
      $region112: #{_forward_batched.1} parent=5 // pred_fallthru
        _
    $region6: #{_forward_batched.1} parent=1 // loop_footer
      %s13 = sadd.s32 1, %s9
    $region7: #{_forward_batched.1} parent=1 // loop_footer_branch
      %8 = sbr.rel target = $region3
    $region8: #{_forward_batched.1} parent=1 // loop_exit
      _

</llo_original>
